<compile_context>
chip_gen: v6e
topology: v6e:2x2x1
jax: 0.10.0
libtpu: 0.0.40
codegen_flags: <defaults>
</compile_context>

<pallas_src>
import functools

import jax
import jax.numpy as jnp
from jax import lax
from jax.experimental import pallas as pl
from jax.experimental.pallas import tpu as pltpu

MAX_BAGS_PER_TILE = 256  # bags pooled per grid step (output sublane tile)


def _round_up(x, m):
    return ((x + m - 1) // m) * m


def _emb_bag_kernel(bag_ref, idx_ref, w_ref, out_ref):
    """Sum-pool one tile of bags for one table, entirely on the MXU.

    bag_ref : VMEM (1, P)        int32  bag id of each index position (-1 = pad)
    idx_ref : VMEM (1, P)        int32  row id of each position (-1 = invalid)
    w_ref   : VMEM (Vpad, Dpad)  bf16   this table's (padded) embedding weight
    out_ref : VMEM (BT, Dpad)    f32    pooled output tile (full-lane store)
    """
    bt = out_ref.shape[0]
    p = idx_ref.shape[1]
    vpad = w_ref.shape[0]

    # seg[b, i] = 1 iff flat position i belongs to global bag (tile*BT + b).
    row_bag = pl.program_id(1) * bt + lax.broadcasted_iota(jnp.int32, (bt, p), 0)
    seg = (bag_ref[...] == row_bag).astype(jnp.bfloat16)            # (BT, P)

    # one_hot[r, i] = 1 iff position i selects row r of this table (-1 never matches).
    rows = lax.broadcasted_iota(jnp.int32, (vpad, p), 0)
    one_hot = (idx_ref[...] == rows).astype(jnp.bfloat16)           # (Vpad, P)

    # counts[b, r] = multiplicity of row r inside bag b (small exact integers).
    counts = lax.dot_general(
        seg, one_hot, (((1,), (1,)), ((), ())),
        preferred_element_type=jnp.float32)                         # (BT, Vpad)  MXU

    # Pooled embeddings for this table; one full 128-lane-wide unmasked store.
    out_ref[...] = jnp.dot(counts.astype(jnp.bfloat16), w_ref[...],
                           preferred_element_type=jnp.float32)      # (BT, Dpad)  MXU


@functools.partial(
    jax.jit,
    static_argnames=("vocabs", "bag_tile", "num_bags_padded", "n_pad"))
def _fused_forward(w_stack, idx_tup, off_tup, *, vocabs, bag_tile,
                   num_bags_padded, n_pad):
    """CSR offsets -> per-position bag ids, stack per-table rows, run the kernel."""
    num_tables, vpad, dpad = w_stack.shape
    pos = jnp.arange(n_pad, dtype=jnp.int32)

    bag_rows, idx_rows = [], []
    for t in range(num_tables):
        ix = idx_tup[t].astype(jnp.int32)
        off = off_tup[t].astype(jnp.int32)
        ni = ix.shape[0]
        # Bag id of each index position (PyTorch EmbeddingBag offsets are bag starts;
        # empty bags produce duplicate offsets and pool to zero).
        bag_id = (jnp.searchsorted(off, pos, side="right") - 1).astype(jnp.int32)
        in_range = pos < ni
        bag_rows.append(jnp.where(in_range, bag_id, -1))            # pad tail -> no bag
        ix_p = jnp.pad(ix, (0, n_pad - ni))
        # Out-of-range indices contribute zero instead of a silent OOB hit.
        valid = in_range & (ix_p >= 0) & (ix_p < vocabs[t])
        idx_rows.append(jnp.where(valid, ix_p, -1))
    bag_ids = jnp.stack(bag_rows)[:, None, :]                       # (T, 1, P)
    idx_ids = jnp.stack(idx_rows)[:, None, :]                       # (T, 1, P)

    grid = (num_tables, num_bags_padded // bag_tile)

    return pl.pallas_call(
        _emb_bag_kernel,
        out_shape=jax.ShapeDtypeStruct((num_tables, num_bags_padded, dpad),
                                       jnp.float32),
        grid=grid,
        in_specs=[
            # Per-table rows stay VMEM-resident across the inner bag-tile axis.
            pl.BlockSpec((None, 1, n_pad), lambda t, i: (t, 0, 0)),     # bag ids
            pl.BlockSpec((None, 1, n_pad), lambda t, i: (t, 0, 0)),     # indices
            pl.BlockSpec((None, vpad, dpad), lambda t, i: (t, 0, 0)),   # weights
        ],
        out_specs=pl.BlockSpec((None, bag_tile, dpad), lambda t, i: (t, i, 0)),
        compiler_params=pltpu.CompilerParams(
            # every (table, bag-tile) cell is independent -> megacore sharding
            dimension_semantics=("parallel", "parallel"),
            # explicit scoped-VMEM budget, safe on v5e/v6e/v7x
            vmem_limit_bytes=32 * 1024 * 1024,
        ),
    )(bag_ids, idx_ids, w_stack)


class Emb:
    """JAX/Pallas re-implementation of the PyTorch `Emb` module (forward only).

    forward(offsets, indices) returns (list_of_pooled_outputs, emb_tab_ids, delay),
    matching torch.nn.EmbeddingBag(..., mode='sum') per table.
    (RPC / DDP / CUDA-event timing plumbing of the original has no TPU-kernel
    equivalent and is omitted; `delay` is always 0, like the reference path.)
    """

    def __init__(self, embedding_dim, num_embeddings, emb_tab_ids, key):
        self.emb_tab_ids = list(emb_tab_ids)
        self.embedding_dim = int(embedding_dim)
        self.vocabs = tuple(int(num_embeddings[i]) for i in self.emb_tab_ids)
        self.num_tables = len(self.emb_tab_ids)
        d = self.embedding_dim

        # Padded per-table layout: rows to a multiple of 16 (bf16 sublane packing),
        # lanes to a multiple of 128 (unmasked lane-dense stores / loads).
        self.vpad = _round_up(max(self.vocabs), 16)
        self.dpad = _round_up(d, 128)

        tables = []
        for v in self.vocabs:
            key, sub = jax.random.split(key)
            # nn.EmbeddingBag default init: weight ~ N(0, 1).  Stored in bf16
            # (halves VMEM/HBM footprint); accumulation stays f32.
            w = jax.random.normal(sub, (v, d), dtype=jnp.float32).astype(jnp.bfloat16)
            tables.append(w)
        self.tables = tables

        # Stacked (not block-diagonal) weight: (T, Vpad, Dpad) -> O(T) VMEM.
        w_stack = jnp.zeros((self.num_tables, self.vpad, self.dpad), jnp.bfloat16)
        for t, tab in enumerate(tables):
            w_stack = w_stack.at[t, :tab.shape[0], :d].set(tab)
        self.w_stack = w_stack

    def forward(self, offsets, indices):
        return self._run(offsets, indices, bag_tile=None)

    def _run(self, offsets, indices, bag_tile=None):
        d = self.embedding_dim
        idx_tup = tuple(jnp.asarray(indices[v]).astype(jnp.int32)
                        for v in self.emb_tab_ids)
        off_tup = tuple(jnp.asarray(offsets[v]).astype(jnp.int32)
                        for v in self.emb_tab_ids)
        num_bags = [int(o.shape[0]) for o in off_tup]
        n_max = max(int(ix.shape[0]) for ix in idx_tup)
        n_pad = _round_up(max(n_max, 1), 128)          # lane-aligned position axis
        b_max = max(num_bags)
        if bag_tile is None:
            # Large tile so each grid step does meaningful MXU work (up to 256
            # bags/step); never larger than the padded batch itself.
            bag_tile = min(MAX_BAGS_PER_TILE, _round_up(b_max, 8))
        b_pad = _round_up(b_max, bag_tile)

        out = _fused_forward(self.w_stack, idx_tup, off_tup,
                             vocabs=self.vocabs, bag_tile=bag_tile,
                             num_bags_padded=b_pad, n_pad=n_pad)
        outputs = [out[t, :num_bags[t], :d] for t in range(self.num_tables)]
        delay = 0  # timing path disabled in the reference forward
        return (outputs, self.emb_tab_ids, delay)


def _reference_embedding_bag_sum(table, indices, offsets):
    """Pure-JAX reference: segment-sum of gathered rows (f32 accumulation)."""
    total = indices.shape[0]
    num_bags = offsets.shape[0]
    pos = jnp.arange(total)
    bag_id = jnp.sum(pos[:, None] >= offsets[None, :], axis=1) - 1
    rows = table.astype(jnp.float32)[indices]
    return jnp.zeros((num_bags, table.shape[1]), jnp.float32).at[bag_id].add(rows)


if __name__ == "__main__":
    key = jax.random.PRNGKey(0)

    embedding_dim = 32
    num_embeddings = [50, 64, 40]
    emb_tab_ids = [0, 1, 2]

    key, init_key = jax.random.split(key)
    module = Emb(embedding_dim, num_embeddings, emb_tab_ids, init_key)

    def make_batch(key, bag_sizes_per_table):
        offsets, indices = {}, {}
        for tid in emb_tab_ids:
            sizes = bag_sizes_per_table[tid]
            offs = [0]
            for s in sizes[:-1]:
                offs.append(offs[-1] + s)
            total = sum(sizes)
            key, sub = jax.random.split(key)
            indices[tid] = jax.random.randint(
                sub, (total,), 0, num_embeddings[tid], dtype=jnp.int32)
            offsets[tid] = jnp.array(offs, dtype=jnp.int32)
        return key, offsets, indices

    # ---- test 1: 8 bags / table, single bag tile per table ----
    bag_sizes = {tid: [1, 2, 3, 4, 2, 3, 1, 4] for tid in emb_tab_ids}
    key, offsets, indices = make_batch(key, bag_sizes)
    outputs, tab_ids, delay = module.forward(offsets, indices)
    outputs = [jax.block_until_ready(o) for o in outputs]
    for ind, tid in enumerate(tab_ids):
        ref = _reference_embedding_bag_sum(module.tables[ind], indices[tid],
                                           offsets[tid])
        assert outputs[ind].shape == (len(bag_sizes[tid]), embedding_dim)
        assert jnp.allclose(outputs[ind], ref, atol=1e-5, rtol=1e-5), (
            f"mismatch on table {tid}")

    # ---- test 2: 24 bags / table (incl. empty bags, per-table index counts
    #      differ), forced bag_tile=8 so each table spans 3 bag tiles ----
    bag_sizes2 = {tid: [((i + tid) % 5) for i in range(24)] for tid in emb_tab_ids}
    key, offsets2, indices2 = make_batch(key, bag_sizes2)
    outputs2, _, _ = module._run(offsets2, indices2, bag_tile=8)
    outputs2 = [jax.block_until_ready(o) for o in outputs2]
    for ind, tid in enumerate(emb_tab_ids):
        ref = _reference_embedding_bag_sum(module.tables[ind], indices2[tid],
                                           offsets2[tid])
        assert jnp.allclose(outputs2[ind], ref, atol=1e-5, rtol=1e-5), (
            f"mismatch on table {tid} (tiled)")

    print("KERNEL_OK")
</pallas_src>

<mosaic_0001>
module attributes {stable_mosaic.version = 11 : i64} {
  func.func @_emb_bag_kernel(%arg0: i32, %arg1: i32, %arg2: memref<1x1x128xi32, #tpu.memory_space<vmem>>, %arg3: memref<1x1x128xi32, #tpu.memory_space<vmem>>, %arg4: memref<1x64x128xbf16, #tpu.memory_space<vmem>>, %arg5: memref<1x8x128xf32, #tpu.memory_space<vmem>>) attributes {dimension_semantics = [#tpu.dimension_semantics<parallel>, #tpu.dimension_semantics<parallel>], iteration_bounds = array<i64: 3, 1>, scalar_prefetch = 0 : i64, scratch_operands = 0 : i64, tpu.core_type = #tpu.core_type<tc>, window_params = [{transform_indices = @transform_0, window_bounds = array<i64: 1, 1, 128>}, {transform_indices = @transform_1, window_bounds = array<i64: 1, 1, 128>}, {transform_indices = @transform_2, window_bounds = array<i64: 1, 64, 128>}, {transform_indices = @transform_3, window_bounds = array<i64: 1, 8, 128>}]} {
    %c8_i32 = arith.constant 8 : i32
    %0 = arith.muli %arg1, %c8_i32 : i32
    %1 = tpu.iota {dimensions = array<i32: 0>} : vector<8x128xi32>
    %2 = vector.broadcast %0 : i32 to vector<8x128xi32>
    %3 = arith.addi %2, %1 : vector<8x128xi32>
    %c0 = arith.constant 0 : index
    %c0_0 = arith.constant 0 : index
    %c0_1 = arith.constant 0 : index
    %4 = vector.load %arg2[%c0, %c0_0, %c0_1] : memref<1x1x128xi32, #tpu.memory_space<vmem>>, vector<1x1x128xi32>
    %5 = vector.shape_cast %4 : vector<1x1x128xi32> to vector<1x128xi32>
    %6 = vector.broadcast %5 : vector<1x128xi32> to vector<8x128xi32>
    %7 = arith.cmpi eq, %6, %3 : vector<8x128xi32>
    %8 = arith.extui %7 : vector<8x128xi1> to vector<8x128xi32>
    %9 = arith.sitofp %8 : vector<8x128xi32> to vector<8x128xf32>
    %10 = arith.truncf %9 : vector<8x128xf32> to vector<8x128xbf16>
    %11 = tpu.iota {dimensions = array<i32: 0>} : vector<64x128xi32>
    %c0_2 = arith.constant 0 : index
    %c0_3 = arith.constant 0 : index
    %c0_4 = arith.constant 0 : index
    %12 = vector.load %arg3[%c0_2, %c0_3, %c0_4] : memref<1x1x128xi32, #tpu.memory_space<vmem>>, vector<1x1x128xi32>
    %13 = vector.shape_cast %12 : vector<1x1x128xi32> to vector<1x128xi32>
    %14 = vector.broadcast %13 : vector<1x128xi32> to vector<64x128xi32>
    %15 = arith.cmpi eq, %14, %11 : vector<64x128xi32>
    %16 = arith.extui %15 : vector<64x128xi1> to vector<64x128xi32>
    %17 = arith.sitofp %16 : vector<64x128xi32> to vector<64x128xf32>
    %18 = arith.truncf %17 : vector<64x128xf32> to vector<64x128xbf16>
    %cst = arith.constant dense<0.000000e+00> : vector<8x64xf32>
    %19 = tpu.matmul %10, %18, %cst {dimension_numbers = #tpu.dot_dimension_numbers<[1], [1], [0], [0], [0, 0, 1, 0], [], []>} : vector<8x128xbf16>, vector<64x128xbf16>, vector<8x64xf32> -> vector<8x64xf32>
    %20 = arith.truncf %19 : vector<8x64xf32> to vector<8x64xbf16>
    %c0_5 = arith.constant 0 : index
    %c0_6 = arith.constant 0 : index
    %c0_7 = arith.constant 0 : index
    %21 = vector.load %arg4[%c0_5, %c0_6, %c0_7] : memref<1x64x128xbf16, #tpu.memory_space<vmem>>, vector<1x64x128xbf16>
    %22 = vector.shape_cast %21 : vector<1x64x128xbf16> to vector<64x128xbf16>
    %cst_8 = arith.constant dense<0.000000e+00> : vector<8x128xf32>
    %23 = tpu.matmul %20, %22, %cst_8 {dimension_numbers = #tpu.dot_dimension_numbers<[1], [0], [0], [1], [0, 0, 1, 1], [], []>} : vector<8x64xbf16>, vector<64x128xbf16>, vector<8x128xf32> -> vector<8x128xf32>
    %c0_9 = arith.constant 0 : index
    %c0_10 = arith.constant 0 : index
    %c0_11 = arith.constant 0 : index
    %24 = vector.load %arg5[%c0_9, %c0_10, %c0_11] : memref<1x8x128xf32, #tpu.memory_space<vmem>>, vector<1x8x128xf32>
    %25 = vector.shape_cast %24 : vector<1x8x128xf32> to vector<8x128xf32>
    %26 = vector.shape_cast %23 : vector<8x128xf32> to vector<1x8x128xf32>
    tpu.vector_store %arg5[%c0_9, %c0_10, %c0_11], %26 {strides = array<i32>} : memref<1x8x128xf32, #tpu.memory_space<vmem>>, vector<1x8x128xf32>,
    return
  }
  func.func @transform_0(%arg0: i32, %arg1: i32) -> (i32, i32, i32) {
    %c0_i32 = arith.constant 0 : i32
    %c0_i32_0 = arith.constant 0 : i32
    %c0_i32_1 = arith.constant 0 : i32
    return %arg0, %c0_i32, %c0_i32_0 : i32, i32, i32
  }
  func.func @transform_1(%arg0: i32, %arg1: i32) -> (i32, i32, i32) {
    %c0_i32 = arith.constant 0 : i32
    %c0_i32_0 = arith.constant 0 : i32
    %c0_i32_1 = arith.constant 0 : i32
    return %arg0, %c0_i32, %c0_i32_0 : i32, i32, i32
  }
  func.func @transform_2(%arg0: i32, %arg1: i32) -> (i32, i32, i32) {
    %c0_i32 = arith.constant 0 : i32
    %c0_i32_0 = arith.constant 0 : i32
    %c0_i32_1 = arith.constant 0 : i32
    return %arg0, %c0_i32, %c0_i32_0 : i32, i32, i32
  }
  func.func @transform_3(%arg0: i32, %arg1: i32) -> (i32, i32, i32) {
    %c0_i32 = arith.constant 0 : i32
    %c0_i32_0 = arith.constant 0 : i32
    return %arg0, %arg1, %c0_i32 : i32, i32, i32
  }
}

</mosaic_0001>

<llo_original>
// kernel: custom-call.5
$region0: #{custom-call.5}
  %s0 = inlined_call_operand.vmem [shape: u32[128], index: 0, kind: output, shape index: {}]

// kernel: _fused_forward.1
$region0: #{_fused_forward.1}
  #allocation0 [shape = 'u32[]', space=smem, size = 0x4, offset = 0x4, fixed_abs, tag = 'smem constant byte address 0x4 - core index']
  #allocation1 [shape = 'u32[144,128]{1,0:T(1,128)}', space=vmem, size = 0x12000, scoped, tag = 'internal scratch']
  %s0 = inlined_call_operand.vmem [shape: s32[3,1,128], index: 0, kind: input, shape index: {}]
  %s1 = inlined_call_operand.vmem [shape: s32[3,1,128], index: 1, kind: input, shape index: {}]
  %s2 = inlined_call_operand.vmem [shape: bf16[3,64,128], index: 2, kind: input, shape index: {}]
  %s3 = inlined_call_operand.hbm [shape: f32[3,8,128], index: 3, kind: output, shape index: {}]
  %s4 = sld [smem:[#allocation0]]
  $region45: #{_fused_forward.1} parent=0
    _
  %s6 = ssub.s32 1, %s4
  %s7 = scalar_select 0, %s6, %s4
  $region1: #{_fused_forward.1} parent=0
    #allocation2 [shape = 'u8[8192]{0}', space=vmem, size = 0x2000, scoped, tag = 'output window, operand 0']
    #allocation3 [shape = 's32[2]{0}', space=sflag, size = 0x8, scoped, tag = 'scoped memory for _fused_forward.1']
    %8 = vsyncpa [#allocation3], 0
    %s9 = scalar_lea.sflag [#allocation3], 1
    %10 = vsyncpa %s9, 0
    loop: start=0, step=1, limit=5
    $region2: #{_fused_forward.1} parent=1 // loop_pre_header
      _
    $region3: #{_fused_forward.1} parent=1 // loop_header
      %s12 = sphi 0, %s16
      %p13 = scmp.ge.s32.totalorder %s12, 5
      %s19 = sphi 0, %s31
      %s20 = sphi 0, %s27
      %s21 = sphi 0, %s19
      %s22 = sphi 0, %s20
      %s23 = sphi 0, %s21
      %s24 = sphi 0, %s22
      %s34 = sphi 0, %s36
      %s37 = sphi 0, %s34
      %s38 = sphi 0, %s37
      %s54 = sphi 0, %s38
      %s60 = sphi 0, %s62
      %s63 = sphi 0, %s60
      %s64 = sphi 0, %s63
      %s80 = sphi 0, %s64
      %s86 = sphi 0, %s88
      %s89 = sphi 0, %s86
      %s90 = sphi 0, %s89
      %s106 = sphi 0, %s90
      %s114 = sphi 0, %s116
      %s117 = sphi 0, %s114
      %s118 = sphi 0, %s117
      %s134 = sphi 0, %s118
    $region4: #{_fused_forward.1} parent=1 // loop_header_branch
      %15 = sbr.rel (%p13) target = $region8
    $region5: #{_fused_forward.1} parent=1 // loop_body
      %s17 = ssub.s32 %s12, 1
      %s18 = ssub.s32 %s12, 2
      %s25 = sadd.s32 1, %s20
      %p26 = scmp.ge.s32.totalorder %s25, 1
      %s27 = scalar_select %p26, 0, %s25
      %s28 = sadd.s32 1, %s19
      %s29 = scalar_select %p26, %s28, %s19
      %p30 = scmp.ge.s32.totalorder %s29, 3
      %s31 = scalar_select %p30, 0, %s29
      %s32 = ssub.s32 %s19, %s31
      %p33 = scmp.eq.s32.totalorder %s32, 0
      %s35 = sadd.s32 %s34, 1
      %s36 = scalar_select %p33, %s34, %s35
      %p39 = pneg %p33
      %p40 = scmp.eq.s32.totalorder %s12, 2
      %p41 = por %p39, %p40
      %p42 = scmp.ne.s32.totalorder %s34, %s37
      %p43 = scmp.eq.s32.totalorder %s12, 0
      %p44 = por %p42, %p43
      %p45 = scmp.ne.s32.totalorder %s34, %s37
      %p46 = scmp.eq.s32.totalorder %s17, 2
      %p47 = por %p45, %p46
      %p48 = scmp.ne.s32.totalorder %s37, %s38
      %p49 = scmp.eq.s32.totalorder %s17, 0
      %p50 = por %p48, %p49
      %p51 = scmp.ne.s32.totalorder %s37, %s38
      %p52 = scmp.eq.s32.totalorder %s18, 2
      %p53 = por %p51, %p52
      %p55 = scmp.ne.s32.totalorder %s38, %s54
      %p56 = scmp.eq.s32.totalorder %s18, 0
      %p57 = por %p55, %p56
      %s58 = ssub.s32 %s19, %s31
      %p59 = scmp.eq.s32.totalorder %s58, 0
      %s61 = sadd.s32 %s60, 1
      %s62 = scalar_select %p59, %s60, %s61
      %p65 = pneg %p59
      %p66 = scmp.eq.s32.totalorder %s12, 2
      %p67 = por %p65, %p66
      %p68 = scmp.ne.s32.totalorder %s60, %s63
      %p69 = scmp.eq.s32.totalorder %s12, 0
      %p70 = por %p68, %p69
      %p71 = scmp.ne.s32.totalorder %s60, %s63
      %p72 = scmp.eq.s32.totalorder %s17, 2
      %p73 = por %p71, %p72
      %p74 = scmp.ne.s32.totalorder %s63, %s64
      %p75 = scmp.eq.s32.totalorder %s17, 0
      %p76 = por %p74, %p75
      %p77 = scmp.ne.s32.totalorder %s63, %s64
      %p78 = scmp.eq.s32.totalorder %s18, 2
      %p79 = por %p77, %p78
      %p81 = scmp.ne.s32.totalorder %s64, %s80
      %p82 = scmp.eq.s32.totalorder %s18, 0
      %p83 = por %p81, %p82
      %s84 = ssub.s32 %s19, %s31
      %p85 = scmp.eq.s32.totalorder %s84, 0
      %s87 = sadd.s32 %s86, 1
      %s88 = scalar_select %p85, %s86, %s87
      %p91 = pneg %p85
      %p92 = scmp.eq.s32.totalorder %s12, 2
      %p93 = por %p91, %p92
      %p94 = scmp.ne.s32.totalorder %s86, %s89
      %p95 = scmp.eq.s32.totalorder %s12, 0
      %p96 = por %p94, %p95
      %p97 = scmp.ne.s32.totalorder %s86, %s89
      %p98 = scmp.eq.s32.totalorder %s17, 2
      %p99 = por %p97, %p98
      %p100 = scmp.ne.s32.totalorder %s89, %s90
      %p101 = scmp.eq.s32.totalorder %s17, 0
      %p102 = por %p100, %p101
      %p103 = scmp.ne.s32.totalorder %s89, %s90
      %p104 = scmp.eq.s32.totalorder %s18, 2
      %p105 = por %p103, %p104
      %p107 = scmp.ne.s32.totalorder %s90, %s106
      %p108 = scmp.eq.s32.totalorder %s18, 0
      %p109 = por %p107, %p108
      %s110 = ssub.s32 %s19, %s31
      %s111 = ssub.s32 %s20, %s27
      %s112 = sor.u32 %s110, %s111
      %p113 = scmp.eq.s32.totalorder %s112, 0
      %s115 = sadd.s32 %s114, 1
      %s116 = scalar_select %p113, %s114, %s115
      %p119 = pneg %p113
      %p120 = scmp.eq.s32.totalorder %s12, 2
      %p121 = por %p119, %p120
      %p122 = scmp.ne.s32.totalorder %s114, %s117
      %p123 = scmp.eq.s32.totalorder %s12, 0
      %p124 = por %p122, %p123
      %p125 = scmp.ne.s32.totalorder %s114, %s117
      %p126 = scmp.eq.s32.totalorder %s17, 2
      %p127 = por %p125, %p126
      %p128 = scmp.ne.s32.totalorder %s117, %s118
      %p129 = scmp.eq.s32.totalorder %s17, 0
      %p130 = por %p128, %p129
      %p131 = scmp.ne.s32.totalorder %s117, %s118
      %p132 = scmp.eq.s32.totalorder %s18, 2
      %p133 = por %p131, %p132
      %p135 = scmp.ne.s32.totalorder %s118, %s134
      %p136 = scmp.eq.s32.totalorder %s18, 0
      %p137 = por %p135, %p136
      %p138 = scmp.le.s32.totalorder 1, %s12
      %p139 = scmp.lt.s32.totalorder %s12, 4
      %p140 = pnand %p138, %p139
      %p141 = pneg %p140
      // Predicated region
      $region9: #{_fused_forward.1} parent=5 // pred_check
        _
      $region10: #{_fused_forward.1} parent=5 // pred_check_branch
        %143 = sbr.rel (%p140) target = $region12
      $region11: #{_fused_forward.1} parent=5 // pred_region
        %s144 = ssub.s32 %s12, 1
      $region12: #{_fused_forward.1} parent=5 // pred_fallthru
        _
      %p145 = scmp.lt.s32.totalorder %s12, 3
      // Predicated region
      $region13: #{_fused_forward.1} parent=5 // pred_check
        %p146 = pneg %p145
      $region14: #{_fused_forward.1} parent=5 // pred_check_branch
        %148 = sbr.rel (%p146) target = $region16
      $region15: #{_fused_forward.1} parent=5 // pred_region
        // Predicated region
        $region17: #{_fused_forward.1} parent=15 // pred_check
          %p149 = pneg %p44
        $region18: #{_fused_forward.1} parent=15 // pred_check_branch
          %151 = sbr.rel (%p149) target = $region20
        $region19: #{_fused_forward.1} parent=15 // pred_region
          %p152 = scmp.lt.s32.totalorder %s19, 2
          %s153 = scalar_select %p152, %s19, 2
          %s154 = scalar_lea.vmem %s0, %s153
        $region20: #{_fused_forward.1} parent=15 // pred_fallthru
          _
        // Predicated region
        $region21: #{_fused_forward.1} parent=15 // pred_check
          %p155 = pneg %p70
        $region22: #{_fused_forward.1} parent=15 // pred_check_branch
          %157 = sbr.rel (%p155) target = $region24
        $region23: #{_fused_forward.1} parent=15 // pred_region
          %p158 = scmp.lt.s32.totalorder %s19, 2
          %s159 = scalar_select %p158, %s19, 2
          %s160 = scalar_lea.vmem %s1, %s159
        $region24: #{_fused_forward.1} parent=15 // pred_fallthru
          _
        // Predicated region
        $region25: #{_fused_forward.1} parent=15 // pred_check
          %p161 = pneg %p96
        $region26: #{_fused_forward.1} parent=15 // pred_check_branch
          %163 = sbr.rel (%p161) target = $region28
        $region27: #{_fused_forward.1} parent=15 // pred_region
          %p164 = scmp.lt.s32.totalorder %s19, 2
          %s165 = scalar_select %p164, %s19, 2
          %s166 = smul.addr %s165, 8
          %s167 = smul.addr %s166, 4
          %s168 = scalar_lea.vmem %s2, %s167
        $region28: #{_fused_forward.1} parent=15 // pred_fallthru
          _
      $region16: #{_fused_forward.1} parent=5 // pred_fallthru
        _
      %p169 = scmp.le.s32.totalorder 1, %s12
      %p170 = scmp.lt.s32.totalorder %s12, 4
      %p171 = pnand %p169, %p170
      %p172 = pneg %p171
      // Predicated region
      $region29: #{_fused_forward.1} parent=5 // pred_check
        _
      $region30: #{_fused_forward.1} parent=5 // pred_check_branch
        %174 = sbr.rel (%p171) target = $region32
      $region31: #{_fused_forward.1} parent=5 // pred_region
        %s175 = ssub.s32 %s12, 1
        %p176 = scmp.lt.s32.totalorder %s21, 2
        %s177 = scalar_select %p176, %s21, 2
        %s178 = scalar_lea.vmem %s0, %s177
        %p179 = pneg %p50
        %p180 = pneg %p47
        %p181 = scmp.lt.s32.totalorder %s21, 2
        %s182 = scalar_select %p181, %s21, 2
        %s183 = scalar_lea.vmem %s1, %s182
        %p184 = pneg %p76
        %p185 = pneg %p73
        %p186 = scmp.lt.s32.totalorder %s21, 2
        %s187 = scalar_select %p186, %s21, 2
        %s188 = smul.addr %s187, 8
        %s189 = smul.addr %s188, 4
        %s190 = scalar_lea.vmem %s2, %s189
        %p191 = pneg %p102
        %p192 = pneg %p99
        %p193 = pneg %p130
        %p194 = pneg %p127
        %s195 = sand.u32 %s117, 1
        %s196 = scalar_lea.sflag [#allocation3], %s195
        %s197 = sand.u32 %s117, 1
        %s198 = smul.addr %s197, 8
        %s199 = scalar_lea.vmem [#allocation2], %s198
        %p200 = scmp.lt.s32.totalorder %s21, 2
        %s201 = scalar_select %p200, %s21, 2
        %s202 = scalar_lea.vmem %s0, %s201
        %p203 = scmp.lt.s32.totalorder %s21, 2
        %s204 = scalar_select %p203, %s21, 2
        %s205 = scalar_lea.vmem %s1, %s204
        %p206 = scmp.lt.s32.totalorder %s21, 2
        %s207 = scalar_select %p206, %s21, 2
        %s208 = smul.addr %s207, 8
        %s209 = smul.addr %s208, 4
        %s210 = scalar_lea.vmem %s2, %s209
        %s212 = smul.u32 %s22, 8
        %v213 = vlaneseq
        %v214 = vshrl.u32 %v213, 7
        %v215 = vstv %s212
        %v216 = vadd.s32 %v215, %v214
        %v217 = vld [vmem:[%s202] sm:$0x1]
        %v218 = vlaneseq
        %v219 = vshrl.u32 %v218, 7
        %v220 = vsub.s32 0, %v219
        %v221 = vrot.slane %v217, %v220
        %vm222 = vcmp.eq.s32.totalorder %v221, %v216
        %v223 = vsel %vm222, 1, 0
        %v224 = vcvt.s32.f32 %v223
        %v225 = vpack.c.bf16 %v224, %v224
        %v226 = vadd.s32 %v214, 8
        %v227 = vadd.s32 %v214, 16
        %v228 = vadd.s32 %v214, 24
        %v229 = vadd.s32 %v214, 32
        %v230 = vadd.s32 %v214, 40
        %v231 = vadd.s32 %v214, 48
        %v232 = vadd.s32 %v214, 56
        %v233 = vld [vmem:[%s205] sm:$0x1]
        %v234 = vlaneseq
        %v235 = vshrl.u32 %v234, 7
        %v236 = vsub.s32 0, %v235
        %v237 = vrot.slane %v233, %v236
        %vm238 = vcmp.eq.s32.totalorder %v237, %v214
        %vm239 = vcmp.eq.s32.totalorder %v237, %v226
        %vm240 = vcmp.eq.s32.totalorder %v237, %v227
        %vm241 = vcmp.eq.s32.totalorder %v237, %v228
        %vm242 = vcmp.eq.s32.totalorder %v237, %v229
        %vm243 = vcmp.eq.s32.totalorder %v237, %v230
        %vm244 = vcmp.eq.s32.totalorder %v237, %v231
        %vm245 = vcmp.eq.s32.totalorder %v237, %v232
        %v246 = vsel %vm238, 1, 0
        %v247 = vsel %vm239, 1, 0
        %v248 = vsel %vm240, 1, 0
        %v249 = vsel %vm241, 1, 0
        %v250 = vsel %vm242, 1, 0
        %v251 = vsel %vm243, 1, 0
        %v252 = vsel %vm244, 1, 0
        %v253 = vsel %vm245, 1, 0
        %v254 = vcvt.s32.f32 %v246
        %v255 = vcvt.s32.f32 %v247
        %v256 = vcvt.s32.f32 %v248
        %v257 = vcvt.s32.f32 %v249
        %v258 = vcvt.s32.f32 %v250
        %v259 = vcvt.s32.f32 %v251
        %v260 = vcvt.s32.f32 %v252
        %v261 = vcvt.s32.f32 %v253
        %v262 = vpack.c.bf16 %v255, %v254
        %v263 = vpack.c.bf16 %v257, %v256
        %v264 = vpack.c.bf16 %v259, %v258
        %v265 = vpack.c.bf16 %v261, %v260
        %266 = vmatprep.subr.bf16.mxu0 0
        %267 = vmatpush1.bf16.xpose.msra.mxu0 0
        %268 = vmatprep.subr.bf16.mxu0 0
        %269 = vmatpush1.bf16.xpose.msra.mxu0 0
        %270 = vmatprep.subr.bf16.mxu0 0
        %271 = vmatpush1.bf16.xpose.msra.mxu0 0
        %272 = vmatprep.subr.bf16.mxu0 0
        %273 = vmatpush1.bf16.xpose.msra.mxu0 0
        %274 = vmatprep.subr.bf16.mxu0 0
        %275 = vmatpush1.bf16.xpose.msra.mxu0 %v265
        %276 = vmatprep.subr.bf16.mxu0 0
        %277 = vmatpush1.bf16.xpose.msra.mxu0 %v264
        %278 = vmatprep.subr.bf16.mxu0 0
        %279 = vmatpush1.bf16.xpose.msra.mxu0 %v263
        %280 = vmatprep.subr.bf16.mxu0 0
        %281 = vmatpush1.bf16.xpose.msra.mxu0 %v262
        %282 = vmatprep.subr.bf16.mxu0 0
        %283 = vmatpush2.bf16.xpose.msra.mxu0 0
        %284 = vmatprep.subr.bf16.mxu0 0
        %285 = vmatpush2.bf16.xpose.msra.mxu0 0
        %286 = vmatprep.subr.bf16.mxu0 0
        %287 = vmatpush2.bf16.xpose.msra.mxu0 0
        %288 = vmatprep.subr.bf16.mxu0 0
        %289 = vmatpush2.bf16.xpose.msra.mxu0 0
        %290 = vmatprep.subr.bf16.mxu0 0
        %291 = vmatpush2.bf16.xpose.msra.mxu0 0
        %292 = vmatprep.subr.bf16.mxu0 0
        %293 = vmatpush2.bf16.xpose.msra.mxu0 0
        %294 = vmatprep.subr.bf16.mxu0 0
        %295 = vmatpush2.bf16.xpose.msra.mxu0 0
        %296 = vmatprep.subr.bf16.mxu0 0
        %297 = vmatpush2.bf16.xpose.msra.mxu0 0
        %298 = vmatprep.mubr.bf16.mxu0 0
        %299 = vmatmul.mubr.bf16.gmra.mxu0 %v225
        %v300 = vpop.f32.mrf.mxu0
        %v301 = vadd.f32 0.0, %v300
        %v302 = vpop.f32.mrf.mxu0
        %v303 = vpop.f32.mrf.mxu0
        %v304 = vpop.f32.mrf.mxu0
        %305 = vdwg.mxu0
        %v306 = vpack.c.bf16 %v301, %v301
        %v307 = vld [vmem:[%s210] sm:$0xf]
        %v308 = vld [vmem:[%s210 + $0x4] sm:$0xf]
        %v309 = vld [vmem:[%s210 + $0x8] sm:$0xf]
        %v310 = vld [vmem:[%s210 + $0xc] sm:$0xf]
        %v311 = vld [vmem:[%s210 + $0x10] sm:$0xf]
        %v312 = vld [vmem:[%s210 + $0x14] sm:$0xf]
        %v313 = vld [vmem:[%s210 + $0x18] sm:$0xf]
        %v314 = vld [vmem:[%s210 + $0x1c] sm:$0xf]
        %v323 = vunpack.c.l.b16 %v307
        %v324 = vunpack.c.l.b16 %v308
        %v325 = vunpack.c.l.b16 %v309
        %v326 = vunpack.c.l.b16 %v310
        %v327 = vunpack.c.l.b16 %v311
        %v328 = vunpack.c.l.b16 %v312
        %v329 = vunpack.c.l.b16 %v313
        %v330 = vunpack.c.l.b16 %v314
        %v331 = vpack.c.b16 %v324, %v323
        %v332 = vpack.c.b16 %v326, %v325
        %v333 = vpack.c.b16 %v328, %v327
        %v334 = vpack.c.b16 %v330, %v329
        %vm339 = vcmask 523264
        %v341 = vsel %vm339, %v306, 0
        %343 = vmatprep.subr.bf16.mxu0 0
        %344 = vmatpush1.bf16.msra.mxu0 0
        %345 = vmatprep.subr.bf16.mxu0 0
        %346 = vmatpush1.bf16.msra.mxu0 0
        %347 = vmatprep.subr.bf16.mxu0 0
        %348 = vmatpush1.bf16.msra.mxu0 0
        %349 = vmatprep.subr.bf16.mxu0 0
        %350 = vmatpush1.bf16.msra.mxu0 0
        %351 = vmatprep.subr.bf16.mxu0 0
        %352 = vmatpush1.bf16.msra.mxu0 %v334
        %353 = vmatprep.subr.bf16.mxu0 0
        %354 = vmatpush1.bf16.msra.mxu0 %v333
        %355 = vmatprep.subr.bf16.mxu0 0
        %356 = vmatpush1.bf16.msra.mxu0 %v332
        %357 = vmatprep.subr.bf16.mxu0 0
        %358 = vmatpush1.bf16.msra.mxu0 %v331
        %359 = vmatprep.subr.bf16.mxu0 0
        %360 = vmatpush2.bf16.msra.mxu0 0
        %361 = vmatprep.subr.bf16.mxu0 0
        %362 = vmatpush2.bf16.msra.mxu0 0
        %363 = vmatprep.subr.bf16.mxu0 0
        %364 = vmatpush2.bf16.msra.mxu0 0
        %365 = vmatprep.subr.bf16.mxu0 0
        %366 = vmatpush2.bf16.msra.mxu0 0
        %367 = vmatprep.subr.bf16.mxu0 0
        %368 = vmatpush2.bf16.msra.mxu0 0
        %369 = vmatprep.subr.bf16.mxu0 0
        %370 = vmatpush2.bf16.msra.mxu0 0
        %371 = vmatprep.subr.bf16.mxu0 0
        %372 = vmatpush2.bf16.msra.mxu0 0
        %373 = vmatprep.subr.bf16.mxu0 0
        %374 = vmatpush2.bf16.msra.mxu0 0
        %375 = vmatprep.mubr.bf16.mxu0 0
        %376 = vmatmul.mubr.bf16.gmra.mxu0 %v341
        %v377 = vpop.f32.mrf.mxu0
        %v378 = vadd.f32 0.0, %v377
        %v379 = vpop.f32.mrf.mxu0
        %v380 = vpop.f32.mrf.mxu0
        %v381 = vpop.f32.mrf.mxu0
        %382 = vdwg.mxu0
        %383 = vst [vmem:[%s199] sm:$0xff] %v378
        %s384 = sand.u32 %s117, 1
        %s385 = scalar_lea.sflag [#allocation3], %s384
        %s386 = sand.u32 %s117, 1
        %s387 = smul.addr %s386, 8
        %s388 = scalar_lea.vmem [#allocation2], %s387
        // Predicated region
        $region33: #{_fused_forward.1} parent=31 // pred_check
          %p389 = pneg %p127
        $region34: #{_fused_forward.1} parent=31 // pred_check_branch
          %391 = sbr.rel (%p389) target = $region36
        $region35: #{_fused_forward.1} parent=31 // pred_region
          %s393 = ssub.s32 128, 128
          %394 = vsyncadd %s385, %s393
          %s395 = sadd.s32 %s22, %s21
          %s396 = smul.addr %s395, 128
          %s397 = scalar_lea.hbm %s3, %s396
          %s399 = sshll.u32 %s388, 4
          %s400 = int_to_ptr.vmem [resolvable:$true] %s399
          %402 = dma.vmem_to_hbm [thread:$0]  %s400, 128, %s397, %s385
        $region36: #{_fused_forward.1} parent=31 // pred_fallthru
          _
      $region32: #{_fused_forward.1} parent=5 // pred_fallthru
        _
      %p403 = scmp.le.s32.totalorder 2, %s12
      // Predicated region
      $region37: #{_fused_forward.1} parent=5 // pred_check
        %p404 = pneg %p403
      $region38: #{_fused_forward.1} parent=5 // pred_check_branch
        %406 = sbr.rel (%p404) target = $region40
      $region39: #{_fused_forward.1} parent=5 // pred_region
        %s407 = ssub.s32 %s12, 2
        // Predicated region
        $region41: #{_fused_forward.1} parent=39 // pred_check
          %p408 = pneg %p133
        $region42: #{_fused_forward.1} parent=39 // pred_check_branch
          %410 = sbr.rel (%p408) target = $region44
        $region43: #{_fused_forward.1} parent=39 // pred_region
          %s411 = sand.u32 %s118, 1
          %s412 = scalar_lea.sflag [#allocation3], %s411
          %s413 = sand.u32 %s118, 1
          %s414 = smul.addr %s413, 8
          %s415 = scalar_lea.vmem [#allocation2], %s414
          %416 = dma.done %s412, 128
        $region44: #{_fused_forward.1} parent=39 // pred_fallthru
          _
      $region40: #{_fused_forward.1} parent=5 // pred_fallthru
        _
    $region6: #{_fused_forward.1} parent=1 // loop_footer
      %s16 = sadd.s32 1, %s12
    $region7: #{_fused_forward.1} parent=1 // loop_footer_branch
      %11 = sbr.rel target = $region3
    $region8: #{_fused_forward.1} parent=1 // loop_exit
      _
    %417 = vsyncpa [#allocation3], 1
    %s418 = scalar_lea.sflag [#allocation3], 1
    %419 = vsyncpa %s418, 1

</llo_original>
